<compile_context>
chip_gen: v6e
topology: v6e:2x2x1
jax: 0.10.0
libtpu: 0.0.40
codegen_flags: <defaults>
</compile_context>

<pallas_src>
import math
import functools

import jax
import jax.numpy as jnp
from jax import lax
from jax.experimental import pallas as pl
from jax.experimental.pallas import tpu as pltpu


def _attention2_kernel(emb_ref, emb_all_ref, wq_ref, wkv_ref, wout_ref,
                       o_ref, w_ref, *, num_heads, c1, kv_size, kv_slot, eps):
    H = num_heads
    f32, bf16 = jnp.float32, jnp.bfloat16

    emb = emb_ref[...]          # (N, C1)  bf16
    emb_all = emb_all_ref[...]  # (N, KV)  bf16
    n_tokens = emb.shape[0]

    # All heads' q, already transposed: qT = Wq_stack @ emb^T -> (H*C1, N).
    qt = lax.dot_general(wq_ref[...], emb, (((1,), (1,)), ((), ())),
                         preferred_element_type=f32).astype(bf16)

    # Fused K|V projection for all heads in ONE MXU push (lane-dense output):
    #   kv[:, h*KVSLOT     : h*KVSLOT+KV]     = k_h * (1/sqrt(KV))
    #   kv[:, (H+h)*KVSLOT : (H+h)*KVSLOT+KV] = v_h
    kv = lax.dot_general(emb_all, wkv_ref[...], (((1,), (1,)), ((), ())),
                         preferred_element_type=f32).astype(bf16)   # (N, 2*H*KVSLOT)

    # Head-fused scores: one (H*C1, N) @ (N, H*KVSLOT) push; per-head score
    # planes are the diagonal (C1, KV) blocks.
    k_stack = kv[:, :H * kv_slot]                                    # (N, H*KVSLOT)
    scores_all = lax.dot_general(qt, k_stack, (((1,), (0,)), ((), ())),
                                 preferred_element_type=f32)        # (H*C1, H*KVSLOT)

    inv_plane = 1.0 / float(c1 * kv_size)

    ctx_sum = jnp.zeros((n_tokens, c1), f32)
    prob_sum = jnp.zeros((c1, kv_size), f32)

    for h in range(H):
        s = scores_all[h * c1:(h + 1) * c1,
                       h * kv_slot:h * kv_slot + kv_size]            # (C1, KV) f32

        # InstanceNorm2d (affine=False) over the (C1, KV) plane — two-pass
        # (mean first, then variance of the centered values), all in f32.
        mu = jnp.sum(s) * inv_plane
        cen = s - mu
        var = jnp.sum(cen * cen) * inv_plane
        normed = cen * lax.rsqrt(var + eps)

        # softmax over the KV axis (torch dim=3); exact divide (weights are a
        # user-visible output, so no approx reciprocal).
        m = jnp.max(normed, axis=-1, keepdims=True)
        e = jnp.exp(normed - m)
        probs = e / jnp.sum(e, axis=-1, keepdims=True)               # (C1, KV) f32
        prob_sum = prob_sum + probs

        # context directly in (N, C1) layout: ctx += v_h @ probs_h^T.
        v_h = kv[:, (H + h) * kv_slot:(H + h) * kv_slot + kv_size]   # (N, KV) bf16
        ctx_sum = ctx_sum + lax.dot_general(
            v_h, probs.astype(bf16), (((1,), (1,)), ((), ())),
            preferred_element_type=f32)                              # (N, C1)

    # Output projection.  wout_ref = wout^T / num_heads zero-padded to 128 lanes,
    # so the matmul directly emits a lane-dense (N, 128) slab -> unmasked stores.
    o_ref[...] = lax.dot_general(ctx_sum.astype(bf16), wout_ref[...],
                                 (((1,), (0,)), ((), ())),
                                 preferred_element_type=f32).astype(o_ref.dtype)

    # Mean-over-heads attention probabilities.  (C1=8 x KV=28 -> a single masked
    # vreg store per batch item; negligible.)
    w_ref[...] = (prob_sum * (1.0 / H)).astype(w_ref.dtype)


def attention2_forward(emb, emb_all, wq, wk, wv, wout, *, vis=True, eps=1e-5):
    B, N, C1 = emb.shape
    KV = emb_all.shape[-1]
    H = wq.shape[0]

    f32, bf16 = jnp.float32, jnp.bfloat16

    KVSLOT = ((KV + 31) // 32) * 32        # per-head K/V lane slab (28 -> 32)
    DKV = 2 * H * KVSLOT                   # fused K|V output width (=128 for H=2)
    OUT_LANES = ((C1 + 127) // 128) * 128  # lane-dense `o` slab width (=128)

    # ---- weight packing (wrapper-side; exact in f32 up to the final bf16 cast) --
    # Head-stacked q weights (PyTorch Linear convention W[out, in]).
    wq_stack = wq.astype(f32).reshape(H * C1, C1).astype(bf16)            # (H*C1, C1)

    # Fused K|V weight: 1/sqrt(KV) folded into the key rows, zero padding rows
    # make the per-head lane slabs 32-wide (clean offsets, zero pad lanes).
    w_kv = jnp.zeros((DKV, KV), f32)
    inv_sqrt_kv = 1.0 / math.sqrt(KV)
    for h in range(H):
        w_kv = w_kv.at[h * KVSLOT:h * KVSLOT + KV, :].set(
            wk[h].astype(f32) * inv_sqrt_kv)
        w_kv = w_kv.at[(H + h) * KVSLOT:(H + h) * KVSLOT + KV, :].set(
            wv[h].astype(f32))
    w_kv = w_kv.astype(bf16)                                              # (DKV, KV)

    # Output projection: fold 1/num_heads head-mean AND the 128-lane zero padding.
    wout_pad = jnp.zeros((C1, OUT_LANES), f32)
    wout_pad = wout_pad.at[:, :C1].set(wout.astype(f32).T * (1.0 / H))
    wout_pad = wout_pad.astype(bf16)                                      # (C1, 128)

    emb_b16 = emb.astype(bf16)
    emb_all_b16 = emb_all.astype(bf16)

    kernel = functools.partial(_attention2_kernel, num_heads=H, c1=C1,
                               kv_size=KV, kv_slot=KVSLOT, eps=eps)

    flops_per_b = (2 * H * C1 * C1 * N              # q projection
                   + 2 * N * KV * DKV               # fused K|V projection
                   + 2 * (H * C1) * N * (H * KVSLOT)  # fused scores
                   + 2 * H * N * KV * C1            # context
                   + 2 * N * C1 * OUT_LANES)        # output projection
    bytes_accessed = ((emb_b16.size + emb_all_b16.size + wq_stack.size
                       + w_kv.size + wout_pad.size) * 2
                      + (B * N * OUT_LANES + B * C1 * KV) * 4)
    cost = pl.CostEstimate(flops=B * flops_per_b,
                           transcendentals=B * H * C1 * KV,
                           bytes_accessed=bytes_accessed)

    o_pad, weights = pl.pallas_call(
        kernel,
        out_shape=(
            jax.ShapeDtypeStruct((B, N, OUT_LANES), jnp.float32),
            jax.ShapeDtypeStruct((B, C1, KV), jnp.float32),
        ),
        grid_spec=pltpu.PrefetchScalarGridSpec(
            num_scalar_prefetch=0,
            grid=(B,),
            in_specs=[
                pl.BlockSpec((None, N, C1), lambda b: (b, 0, 0)),
                pl.BlockSpec((None, N, KV), lambda b: (b, 0, 0)),
                pl.BlockSpec((H * C1, C1), lambda b: (0, 0)),
                pl.BlockSpec((DKV, KV), lambda b: (0, 0)),
                pl.BlockSpec((C1, OUT_LANES), lambda b: (0, 0)),
            ],
            out_specs=[
                pl.BlockSpec((None, N, OUT_LANES), lambda b: (b, 0, 0)),
                pl.BlockSpec((None, C1, KV), lambda b: (b, 0, 0)),
            ],
        ),
        compiler_params=pltpu.CompilerParams(
            dimension_semantics=("parallel",)),
        cost_estimate=cost,
    )(emb_b16, emb_all_b16, wq_stack, w_kv, wout_pad)

    o = o_pad[:, :, :C1]          # un-pad the lane-dense slab outside the kernel

    # attn_dropout / proj_dropout are identity in eval mode.
    if vis:
        return o, [weights]
    return o, None


def attention2_reference(emb, emb_all, wq, wk, wv, wout, eps=1e-5):
    """Pure-JAX (f32) replica of the PyTorch forward for verification."""
    KV = emb_all.shape[-1]
    q = jnp.einsum('bnc,hdc->bhnd', emb, wq)        # (B,H,N,C1)
    k = jnp.einsum('bnc,hdc->bhnd', emb_all, wk)    # (B,H,N,KV)
    v = jnp.einsum('bnc,hdc->bhnd', emb_all, wv)    # (B,H,N,KV)
    scores = jnp.einsum('bhnc,bhnk->bhck', q, k) / math.sqrt(KV)   # (B,H,C1,KV)
    mu = scores.mean(axis=(2, 3), keepdims=True)
    var = ((scores - mu) ** 2).mean(axis=(2, 3), keepdims=True)
    normed = (scores - mu) / jnp.sqrt(var + eps)
    probs = jax.nn.softmax(normed, axis=-1)
    weights = probs.mean(axis=1)                    # (B,C1,KV)
    ctx = jnp.einsum('bhck,bhnk->bhcn', probs, v)   # (B,H,C1,N)
    ctx = jnp.transpose(ctx, (0, 3, 2, 1)).mean(axis=3)  # (B,N,C1)
    o = jnp.einsum('bnc,dc->bnd', ctx, wout)
    return o, weights


if __name__ == "__main__":
    # Small deterministic config consistent with the module:
    #   channel_num = (4, 8, 16) -> C1 = 8, KV_size = 28
    #   num_attention_heads = 2, batch = 2, sequence (patch count) N = 16
    B, N = 2, 16
    channel_num = (4, 8, 16)
    C1 = channel_num[1]
    KV = sum(channel_num)
    H = 2

    key = jax.random.PRNGKey(0)
    k_emb, k_all, k_q, k_k, k_v, k_o = jax.random.split(key, 6)

    emb = jax.random.normal(k_emb, (B, N, C1), dtype=jnp.float32)
    emb_all = jax.random.normal(k_all, (B, N, KV), dtype=jnp.float32)

    # Deterministic synthetic parameters (PyTorch Linear weight shape [out, in]).
    wq = 0.1 * jax.random.normal(k_q, (H, C1, C1), dtype=jnp.float32)
    wk = 0.1 * jax.random.normal(k_k, (H, KV, KV), dtype=jnp.float32)
    wv = 0.1 * jax.random.normal(k_v, (H, KV, KV), dtype=jnp.float32)
    wout = 0.1 * jax.random.normal(k_o, (C1, C1), dtype=jnp.float32)

    o, weights = attention2_forward(emb, emb_all, wq, wk, wv, wout, vis=True)
    o = jax.block_until_ready(o)
    w = jax.block_until_ready(weights[0])

    o_ref, w_ref = attention2_reference(emb, emb_all, wq, wk, wv, wout)
    assert o.shape == (B, N, C1) and w.shape == (B, C1, KV)
    # bf16 MXU operands (f32 accumulation) -> slightly looser tolerance than f32.
    assert jnp.allclose(o, o_ref, atol=2e-2, rtol=2e-2), "output mismatch"
    assert jnp.allclose(w, w_ref, atol=2e-2, rtol=2e-2), "weights mismatch"

    print("KERNEL_OK")
</pallas_src>

<mosaic_0001>
module attributes {stable_mosaic.version = 11 : i64} {
  func.func @_attention2_kernel(%arg0: i32, %arg1: memref<1x16x8xbf16, #tpu.memory_space<vmem>>, %arg2: memref<1x16x28xbf16, #tpu.memory_space<vmem>>, %arg3: memref<16x8xbf16, #tpu.memory_space<vmem>>, %arg4: memref<128x28xbf16, #tpu.memory_space<vmem>>, %arg5: memref<8x128xbf16, #tpu.memory_space<vmem>>, %arg6: memref<1x16x128xf32, #tpu.memory_space<vmem>>, %arg7: memref<1x8x28xf32, #tpu.memory_space<vmem>>) attributes {dimension_semantics = [#tpu.dimension_semantics<parallel>], iteration_bounds = array<i64: 2>, scalar_prefetch = 0 : i64, scratch_operands = 0 : i64, tpu.core_type = #tpu.core_type<tc>, window_params = [{transform_indices = @transform_0, window_bounds = array<i64: 1, 16, 8>}, {transform_indices = @transform_1, window_bounds = array<i64: 1, 16, 28>}, {pipeline_mode = #tpu.pipeline_mode<synchronous>, transform_indices = @transform_2, window_bounds = array<i64: 16, 8>}, {pipeline_mode = #tpu.pipeline_mode<synchronous>, transform_indices = @transform_3, window_bounds = array<i64: 128, 28>}, {pipeline_mode = #tpu.pipeline_mode<synchronous>, transform_indices = @transform_4, window_bounds = array<i64: 8, 128>}, {transform_indices = @transform_5, window_bounds = array<i64: 1, 16, 128>}, {transform_indices = @transform_6, window_bounds = array<i64: 1, 8, 28>}]} {
    %c0 = arith.constant 0 : index
    %c0_0 = arith.constant 0 : index
    %c0_1 = arith.constant 0 : index
    %0 = vector.load %arg1[%c0, %c0_0, %c0_1] : memref<1x16x8xbf16, #tpu.memory_space<vmem>>, vector<1x16x8xbf16>
    %1 = vector.shape_cast %0 : vector<1x16x8xbf16> to vector<16x8xbf16>
    %c0_2 = arith.constant 0 : index
    %c0_3 = arith.constant 0 : index
    %c0_4 = arith.constant 0 : index
    %2 = vector.load %arg2[%c0_2, %c0_3, %c0_4] : memref<1x16x28xbf16, #tpu.memory_space<vmem>>, vector<1x16x28xbf16>
    %3 = vector.shape_cast %2 : vector<1x16x28xbf16> to vector<16x28xbf16>
    %c0_5 = arith.constant 0 : index
    %c0_6 = arith.constant 0 : index
    %4 = vector.load %arg3[%c0_5, %c0_6] : memref<16x8xbf16, #tpu.memory_space<vmem>>, vector<16x8xbf16>
    %cst = arith.constant dense<0.000000e+00> : vector<16x16xf32>
    %5 = tpu.matmul %4, %1, %cst {dimension_numbers = #tpu.dot_dimension_numbers<[1], [1], [0], [0], [0, 0, 1, 0], [], []>} : vector<16x8xbf16>, vector<16x8xbf16>, vector<16x16xf32> -> vector<16x16xf32>
    %6 = arith.truncf %5 : vector<16x16xf32> to vector<16x16xbf16>
    %c0_7 = arith.constant 0 : index
    %c0_8 = arith.constant 0 : index
    %7 = vector.load %arg4[%c0_7, %c0_8] : memref<128x28xbf16, #tpu.memory_space<vmem>>, vector<128x28xbf16>
    %cst_9 = arith.constant dense<0.000000e+00> : vector<16x128xf32>
    %8 = tpu.matmul %3, %7, %cst_9 {dimension_numbers = #tpu.dot_dimension_numbers<[1], [1], [0], [0], [0, 0, 1, 0], [], []>} : vector<16x28xbf16>, vector<128x28xbf16>, vector<16x128xf32> -> vector<16x128xf32>
    %9 = arith.truncf %8 : vector<16x128xf32> to vector<16x128xbf16>
    %10 = vector.extract_strided_slice %9 {offsets = [0, 0], sizes = [16, 64], strides = [1, 1]} : vector<16x128xbf16> to vector<16x64xbf16>
    %cst_10 = arith.constant dense<0.000000e+00> : vector<16x64xf32>
    %11 = tpu.matmul %6, %10, %cst_10 {dimension_numbers = #tpu.dot_dimension_numbers<[1], [0], [0], [1], [0, 0, 1, 1], [], []>} : vector<16x16xbf16>, vector<16x64xbf16>, vector<16x64xf32> -> vector<16x64xf32>
    %cst_11 = arith.constant 0.000000e+00 : f32
    %12 = vector.broadcast %cst_11 : f32 to vector<16x8xf32>
    %cst_12 = arith.constant 0.000000e+00 : f32
    %13 = vector.broadcast %cst_12 : f32 to vector<8x28xf32>
    %14 = vector.extract_strided_slice %11 {offsets = [0, 0], sizes = [8, 28], strides = [1, 1]} : vector<16x64xf32> to vector<8x28xf32>
    %15 = vector.shape_cast %14 : vector<8x28xf32> to vector<1x8x28xf32>
    %cst_13 = arith.constant dense<0.000000e+00> : vector<1xf32>
    %16 = vector.multi_reduction <add>, %15, %cst_13 [1, 2] : vector<1x8x28xf32> to vector<1xf32>
    %17 = vector.shape_cast %16 : vector<1xf32> to vector<1x1x1xf32>
    %18 = vector.extract %17[0, 0, 0] : f32 from vector<1x1x1xf32>
    %cst_14 = arith.constant 0.00446428591 : f32
    %19 = arith.mulf %18, %cst_14 : f32
    %20 = vector.broadcast %19 : f32 to vector<8x28xf32>
    %21 = arith.subf %14, %20 : vector<8x28xf32>
    %22 = arith.mulf %21, %21 : vector<8x28xf32>
    %23 = vector.shape_cast %22 : vector<8x28xf32> to vector<1x8x28xf32>
    %cst_15 = arith.constant dense<0.000000e+00> : vector<1xf32>
    %24 = vector.multi_reduction <add>, %23, %cst_15 [1, 2] : vector<1x8x28xf32> to vector<1xf32>
    %25 = vector.shape_cast %24 : vector<1xf32> to vector<1x1x1xf32>
    %26 = vector.extract %25[0, 0, 0] : f32 from vector<1x1x1xf32>
    %cst_16 = arith.constant 0.00446428591 : f32
    %27 = arith.mulf %26, %cst_16 : f32
    %cst_17 = arith.constant 9.99999974E-6 : f32
    %28 = arith.addf %27, %cst_17 : f32
    %29 = math.rsqrt %28 : f32
    %30 = vector.broadcast %29 : f32 to vector<8x28xf32>
    %31 = arith.mulf %21, %30 : vector<8x28xf32>
    %cst_18 = arith.constant dense<0xFF800000> : vector<8xf32>
    %32 = vector.multi_reduction <maximumf>, %31, %cst_18 [1] : vector<8x28xf32> to vector<8xf32>
    %33 = vector.shape_cast %32 : vector<8xf32> to vector<8x1xf32>
    %34 = vector.broadcast %33 : vector<8x1xf32> to vector<8x28xf32>
    %35 = arith.subf %31, %34 : vector<8x28xf32>
    %36 = math.exp %35 : vector<8x28xf32>
    %cst_19 = arith.constant dense<0.000000e+00> : vector<8xf32>
    %37 = vector.multi_reduction <add>, %36, %cst_19 [1] : vector<8x28xf32> to vector<8xf32>
    %38 = vector.shape_cast %37 : vector<8xf32> to vector<8x1xf32>
    %39 = vector.broadcast %38 : vector<8x1xf32> to vector<8x28xf32>
    %40 = arith.divf %36, %39 : vector<8x28xf32>
    %41 = arith.addf %13, %40 : vector<8x28xf32>
    %42 = vector.extract_strided_slice %9 {offsets = [0, 64], sizes = [16, 28], strides = [1, 1]} : vector<16x128xbf16> to vector<16x28xbf16>
    %43 = arith.truncf %40 : vector<8x28xf32> to vector<8x28xbf16>
    %cst_20 = arith.constant dense<0.000000e+00> : vector<16x8xf32>
    %44 = tpu.matmul %42, %43, %cst_20 {dimension_numbers = #tpu.dot_dimension_numbers<[1], [1], [0], [0], [0, 0, 1, 0], [], []>} : vector<16x28xbf16>, vector<8x28xbf16>, vector<16x8xf32> -> vector<16x8xf32>
    %45 = arith.addf %12, %44 : vector<16x8xf32>
    %46 = vector.extract_strided_slice %11 {offsets = [8, 32], sizes = [8, 28], strides = [1, 1]} : vector<16x64xf32> to vector<8x28xf32>
    %47 = vector.shape_cast %46 : vector<8x28xf32> to vector<1x8x28xf32>
    %cst_21 = arith.constant dense<0.000000e+00> : vector<1xf32>
    %48 = vector.multi_reduction <add>, %47, %cst_21 [1, 2] : vector<1x8x28xf32> to vector<1xf32>
    %49 = vector.shape_cast %48 : vector<1xf32> to vector<1x1x1xf32>
    %50 = vector.extract %49[0, 0, 0] : f32 from vector<1x1x1xf32>
    %cst_22 = arith.constant 0.00446428591 : f32
    %51 = arith.mulf %50, %cst_22 : f32
    %52 = vector.broadcast %51 : f32 to vector<8x28xf32>
    %53 = arith.subf %46, %52 : vector<8x28xf32>
    %54 = arith.mulf %53, %53 : vector<8x28xf32>
    %55 = vector.shape_cast %54 : vector<8x28xf32> to vector<1x8x28xf32>
    %cst_23 = arith.constant dense<0.000000e+00> : vector<1xf32>
    %56 = vector.multi_reduction <add>, %55, %cst_23 [1, 2] : vector<1x8x28xf32> to vector<1xf32>
    %57 = vector.shape_cast %56 : vector<1xf32> to vector<1x1x1xf32>
    %58 = vector.extract %57[0, 0, 0] : f32 from vector<1x1x1xf32>
    %cst_24 = arith.constant 0.00446428591 : f32
    %59 = arith.mulf %58, %cst_24 : f32
    %cst_25 = arith.constant 9.99999974E-6 : f32
    %60 = arith.addf %59, %cst_25 : f32
    %61 = math.rsqrt %60 : f32
    %62 = vector.broadcast %61 : f32 to vector<8x28xf32>
    %63 = arith.mulf %53, %62 : vector<8x28xf32>
    %cst_26 = arith.constant dense<0xFF800000> : vector<8xf32>
    %64 = vector.multi_reduction <maximumf>, %63, %cst_26 [1] : vector<8x28xf32> to vector<8xf32>
    %65 = vector.shape_cast %64 : vector<8xf32> to vector<8x1xf32>
    %66 = vector.broadcast %65 : vector<8x1xf32> to vector<8x28xf32>
    %67 = arith.subf %63, %66 : vector<8x28xf32>
    %68 = math.exp %67 : vector<8x28xf32>
    %cst_27 = arith.constant dense<0.000000e+00> : vector<8xf32>
    %69 = vector.multi_reduction <add>, %68, %cst_27 [1] : vector<8x28xf32> to vector<8xf32>
    %70 = vector.shape_cast %69 : vector<8xf32> to vector<8x1xf32>
    %71 = vector.broadcast %70 : vector<8x1xf32> to vector<8x28xf32>
    %72 = arith.divf %68, %71 : vector<8x28xf32>
    %73 = arith.addf %41, %72 : vector<8x28xf32>
    %74 = vector.extract_strided_slice %9 {offsets = [0, 96], sizes = [16, 28], strides = [1, 1]} : vector<16x128xbf16> to vector<16x28xbf16>
    %75 = arith.truncf %72 : vector<8x28xf32> to vector<8x28xbf16>
    %cst_28 = arith.constant dense<0.000000e+00> : vector<16x8xf32>
    %76 = tpu.matmul %74, %75, %cst_28 {dimension_numbers = #tpu.dot_dimension_numbers<[1], [1], [0], [0], [0, 0, 1, 0], [], []>} : vector<16x28xbf16>, vector<8x28xbf16>, vector<16x8xf32> -> vector<16x8xf32>
    %77 = arith.addf %45, %76 : vector<16x8xf32>
    %78 = arith.truncf %77 : vector<16x8xf32> to vector<16x8xbf16>
    %c0_29 = arith.constant 0 : index
    %c0_30 = arith.constant 0 : index
    %79 = vector.load %arg5[%c0_29, %c0_30] : memref<8x128xbf16, #tpu.memory_space<vmem>>, vector<8x128xbf16>
    %cst_31 = arith.constant dense<0.000000e+00> : vector<16x128xf32>
    %80 = tpu.matmul %78, %79, %cst_31 {dimension_numbers = #tpu.dot_dimension_numbers<[1], [0], [0], [1], [0, 0, 1, 1], [], []>} : vector<16x8xbf16>, vector<8x128xbf16>, vector<16x128xf32> -> vector<16x128xf32>
    %c0_32 = arith.constant 0 : index
    %c0_33 = arith.constant 0 : index
    %c0_34 = arith.constant 0 : index
    %81 = vector.load %arg6[%c0_32, %c0_33, %c0_34] : memref<1x16x128xf32, #tpu.memory_space<vmem>>, vector<1x16x128xf32>
    %82 = vector.shape_cast %81 : vector<1x16x128xf32> to vector<16x128xf32>
    %83 = vector.shape_cast %80 : vector<16x128xf32> to vector<1x16x128xf32>
    tpu.vector_store %arg6[%c0_32, %c0_33, %c0_34], %83 {strides = array<i32>} : memref<1x16x128xf32, #tpu.memory_space<vmem>>, vector<1x16x128xf32>,
    %cst_35 = arith.constant 5.000000e-01 : f32
    %84 = vector.broadcast %cst_35 : f32 to vector<8x28xf32>
    %85 = arith.mulf %73, %84 : vector<8x28xf32>
    %c0_36 = arith.constant 0 : index
    %c0_37 = arith.constant 0 : index
    %c0_38 = arith.constant 0 : index
    %86 = vector.load %arg7[%c0_36, %c0_37, %c0_38] : memref<1x8x28xf32, #tpu.memory_space<vmem>>, vector<1x8x28xf32>
    %87 = vector.shape_cast %86 : vector<1x8x28xf32> to vector<8x28xf32>
    %88 = vector.shape_cast %85 : vector<8x28xf32> to vector<1x8x28xf32>
    tpu.vector_store %arg7[%c0_36, %c0_37, %c0_38], %88 {strides = array<i32>} : memref<1x8x28xf32, #tpu.memory_space<vmem>>, vector<1x8x28xf32>,
    return
  }
  func.func @transform_0(%arg0: i32) -> (i32, i32, i32) {
    %c0_i32 = arith.constant 0 : i32
    %c0_i32_0 = arith.constant 0 : i32
    %c0_i32_1 = arith.constant 0 : i32
    return %arg0, %c0_i32, %c0_i32_0 : i32, i32, i32
  }
  func.func @transform_1(%arg0: i32) -> (i32, i32, i32) {
    %c0_i32 = arith.constant 0 : i32
    %c0_i32_0 = arith.constant 0 : i32
    %c0_i32_1 = arith.constant 0 : i32
    return %arg0, %c0_i32, %c0_i32_0 : i32, i32, i32
  }
  func.func @transform_2(%arg0: i32) -> (i32, i32) {
    %c0_i32 = arith.constant 0 : i32
    %c0_i32_0 = arith.constant 0 : i32
    %c0_i32_1 = arith.constant 0 : i32
    return %c0_i32, %c0_i32_0 : i32, i32
  }
  func.func @transform_3(%arg0: i32) -> (i32, i32) {
    %c0_i32 = arith.constant 0 : i32
    %c0_i32_0 = arith.constant 0 : i32
    %c0_i32_1 = arith.constant 0 : i32
    return %c0_i32, %c0_i32_0 : i32, i32
  }
  func.func @transform_4(%arg0: i32) -> (i32, i32) {
    %c0_i32 = arith.constant 0 : i32
    %c0_i32_0 = arith.constant 0 : i32
    %c0_i32_1 = arith.constant 0 : i32
    return %c0_i32, %c0_i32_0 : i32, i32
  }
  func.func @transform_5(%arg0: i32) -> (i32, i32, i32) {
    %c0_i32 = arith.constant 0 : i32
    %c0_i32_0 = arith.constant 0 : i32
    %c0_i32_1 = arith.constant 0 : i32
    return %arg0, %c0_i32, %c0_i32_0 : i32, i32, i32
  }
  func.func @transform_6(%arg0: i32) -> (i32, i32, i32) {
    %c0_i32 = arith.constant 0 : i32
    %c0_i32_0 = arith.constant 0 : i32
    %c0_i32_1 = arith.constant 0 : i32
    return %arg0, %c0_i32, %c0_i32_0 : i32, i32, i32
  }
}

</mosaic_0001>

<llo_original>
// kernel: tpu_custom_call.1
$region0: #{tpu_custom_call.1}
  #allocation0 [shape = 'u32[]', space=smem, size = 0x4, offset = 0x4, fixed_abs, tag = 'smem constant byte address 0x4 - core index']
  #allocation1 [shape = 'u32[144,128]{1,0:T(1,128)}', space=vmem, size = 0x12000, scoped, tag = 'internal scratch']
  %s0 = inlined_call_operand.vmem [shape: bf16[2,16,8], index: 0, kind: input, shape index: {}]
  %s1 = inlined_call_operand.vmem [shape: bf16[2,16,28], index: 1, kind: input, shape index: {}]
  %s2 = inlined_call_operand.vmem [shape: bf16[16,8], index: 2, kind: input, shape index: {}]
  %s3 = inlined_call_operand.vmem [shape: bf16[128,28], index: 3, kind: input, shape index: {}]
  %s4 = inlined_call_operand.vmem [shape: bf16[8,128], index: 4, kind: input, shape index: {}]
  %s5 = inlined_call_operand.hbm [shape: f32[2,16,128], index: 5, kind: output, shape index: {0}]
  %s6 = inlined_call_operand.hbm [shape: f32[2,8,28], index: 6, kind: output, shape index: {1}]
  %7 = xla_tuple %s5, %s6
  %s8 = sld [smem:[#allocation0]]
  $region61: #{tpu_custom_call.1} parent=0
    _
  %s10 = ssub.s32 1, %s8
  %s11 = scalar_select 0, %s10, %s8
  $region1: #{tpu_custom_call.1} parent=0
    #allocation2 [shape = 'u8[16384]{0}', space=vmem, size = 0x4000, scoped, tag = 'output window, operand 0']
    #allocation3 [shape = 's32[2]{0}', space=sflag, size = 0x8, scoped, tag = 'scoped memory for tpu_custom_call.1']
    #allocation4 [shape = 'u8[8192]{0}', space=vmem, size = 0x2000, scoped, tag = 'output window, operand 1']
    #allocation5 [shape = 's32[2]{0}', space=sflag, size = 0x8, scoped, tag = 'scoped memory for tpu_custom_call.1']
    %12 = vsyncpa [#allocation3], 0
    %s13 = scalar_lea.sflag [#allocation3], 1
    %14 = vsyncpa %s13, 0
    %15 = vsyncpa [#allocation5], 0
    %s16 = scalar_lea.sflag [#allocation5], 1
    %17 = vsyncpa %s16, 0
    loop: start=0, step=1, limit=4
    $region2: #{tpu_custom_call.1} parent=1 // loop_pre_header
      _
    $region3: #{tpu_custom_call.1} parent=1 // loop_header
      %s19 = sphi 0, %s23
      %p20 = scmp.ge.s32.totalorder %s19, 4
      %s29 = sphi 0, %s31
      %s32 = sphi 0, %s29
      %s33 = sphi 0, %s32
      %s49 = sphi 0, %s33
      %s55 = sphi 0, %s57
      %s58 = sphi 0, %s55
      %s59 = sphi 0, %s58
      %s75 = sphi 0, %s59
      %s79 = sphi 0, %s79
      %s81 = sphi 0, %s79
      %s82 = sphi 0, %s81
      %s96 = sphi 0, %s82
      %s100 = sphi 0, %s100
      %s102 = sphi 0, %s100
      %s103 = sphi 0, %s102
      %s117 = sphi 0, %s103
      %s121 = sphi 0, %s121
      %s123 = sphi 0, %s121
      %s124 = sphi 0, %s123
      %s138 = sphi 0, %s124
      %s144 = sphi 0, %s146
      %s147 = sphi 0, %s144
      %s148 = sphi 0, %s147
      %s164 = sphi 0, %s148
      %s170 = sphi 0, %s172
      %s173 = sphi 0, %s170
      %s174 = sphi 0, %s173
      %s190 = sphi 0, %s174
    $region4: #{tpu_custom_call.1} parent=1 // loop_header_branch
      %22 = sbr.rel (%p20) target = $region8
    $region5: #{tpu_custom_call.1} parent=1 // loop_body
      %s24 = ssub.s32 %s19, 1
      %s25 = ssub.s32 %s19, 2
      %s26 = sadd.s32 %s19, 1
      %s27 = ssub.s32 %s19, %s26
      %p28 = scmp.eq.s32.totalorder %s27, 0
      %s30 = sadd.s32 %s29, 1
      %s31 = scalar_select %p28, %s29, %s30
      %p34 = pneg %p28
      %p35 = scmp.eq.s32.totalorder %s19, 1
      %p36 = por %p34, %p35
      %p37 = scmp.ne.s32.totalorder %s29, %s32
      %p38 = scmp.eq.s32.totalorder %s19, 0
      %p39 = por %p37, %p38
      %p40 = scmp.ne.s32.totalorder %s29, %s32
      %p41 = scmp.eq.s32.totalorder %s24, 1
      %p42 = por %p40, %p41
      %p43 = scmp.ne.s32.totalorder %s32, %s33
      %p44 = scmp.eq.s32.totalorder %s24, 0
      %p45 = por %p43, %p44
      %p46 = scmp.ne.s32.totalorder %s32, %s33
      %p47 = scmp.eq.s32.totalorder %s25, 1
      %p48 = por %p46, %p47
      %p50 = scmp.ne.s32.totalorder %s33, %s49
      %p51 = scmp.eq.s32.totalorder %s25, 0
      %p52 = por %p50, %p51
      %s53 = ssub.s32 %s19, %s26
      %p54 = scmp.eq.s32.totalorder %s53, 0
      %s56 = sadd.s32 %s55, 1
      %s57 = scalar_select %p54, %s55, %s56
      %p60 = pneg %p54
      %p61 = scmp.eq.s32.totalorder %s19, 1
      %p62 = por %p60, %p61
      %p63 = scmp.ne.s32.totalorder %s55, %s58
      %p64 = scmp.eq.s32.totalorder %s19, 0
      %p65 = por %p63, %p64
      %p66 = scmp.ne.s32.totalorder %s55, %s58
      %p67 = scmp.eq.s32.totalorder %s24, 1
      %p68 = por %p66, %p67
      %p69 = scmp.ne.s32.totalorder %s58, %s59
      %p70 = scmp.eq.s32.totalorder %s24, 0
      %p71 = por %p69, %p70
      %p72 = scmp.ne.s32.totalorder %s58, %s59
      %p73 = scmp.eq.s32.totalorder %s25, 1
      %p74 = por %p72, %p73
      %p76 = scmp.ne.s32.totalorder %s59, %s75
      %p77 = scmp.eq.s32.totalorder %s25, 0
      %p78 = por %p76, %p77
      %s80 = sadd.s32 %s79, 1
      %p83 = scmp.eq.s32.totalorder %s19, 1
      %p84 = scmp.ne.s32.totalorder %s79, %s81
      %p85 = scmp.eq.s32.totalorder %s19, 0
      %p86 = por %p84, %p85
      %p87 = scmp.ne.s32.totalorder %s79, %s81
      %p88 = scmp.eq.s32.totalorder %s24, 1
      %p89 = por %p87, %p88
      %p90 = scmp.ne.s32.totalorder %s81, %s82
      %p91 = scmp.eq.s32.totalorder %s24, 0
      %p92 = por %p90, %p91
      %p93 = scmp.ne.s32.totalorder %s81, %s82
      %p94 = scmp.eq.s32.totalorder %s25, 1
      %p95 = por %p93, %p94
      %p97 = scmp.ne.s32.totalorder %s82, %s96
      %p98 = scmp.eq.s32.totalorder %s25, 0
      %p99 = por %p97, %p98
      %s101 = sadd.s32 %s100, 1
      %p104 = scmp.eq.s32.totalorder %s19, 1
      %p105 = scmp.ne.s32.totalorder %s100, %s102
      %p106 = scmp.eq.s32.totalorder %s19, 0
      %p107 = por %p105, %p106
      %p108 = scmp.ne.s32.totalorder %s100, %s102
      %p109 = scmp.eq.s32.totalorder %s24, 1
      %p110 = por %p108, %p109
      %p111 = scmp.ne.s32.totalorder %s102, %s103
      %p112 = scmp.eq.s32.totalorder %s24, 0
      %p113 = por %p111, %p112
      %p114 = scmp.ne.s32.totalorder %s102, %s103
      %p115 = scmp.eq.s32.totalorder %s25, 1
      %p116 = por %p114, %p115
      %p118 = scmp.ne.s32.totalorder %s103, %s117
      %p119 = scmp.eq.s32.totalorder %s25, 0
      %p120 = por %p118, %p119
      %s122 = sadd.s32 %s121, 1
      %p125 = scmp.eq.s32.totalorder %s19, 1
      %p126 = scmp.ne.s32.totalorder %s121, %s123
      %p127 = scmp.eq.s32.totalorder %s19, 0
      %p128 = por %p126, %p127
      %p129 = scmp.ne.s32.totalorder %s121, %s123
      %p130 = scmp.eq.s32.totalorder %s24, 1
      %p131 = por %p129, %p130
      %p132 = scmp.ne.s32.totalorder %s123, %s124
      %p133 = scmp.eq.s32.totalorder %s24, 0
      %p134 = por %p132, %p133
      %p135 = scmp.ne.s32.totalorder %s123, %s124
      %p136 = scmp.eq.s32.totalorder %s25, 1
      %p137 = por %p135, %p136
      %p139 = scmp.ne.s32.totalorder %s124, %s138
      %p140 = scmp.eq.s32.totalorder %s25, 0
      %p141 = por %p139, %p140
      %s142 = ssub.s32 %s19, %s26
      %p143 = scmp.eq.s32.totalorder %s142, 0
      %s145 = sadd.s32 %s144, 1
      %s146 = scalar_select %p143, %s144, %s145
      %p149 = pneg %p143
      %p150 = scmp.eq.s32.totalorder %s19, 1
      %p151 = por %p149, %p150
      %p152 = scmp.ne.s32.totalorder %s144, %s147
      %p153 = scmp.eq.s32.totalorder %s19, 0
      %p154 = por %p152, %p153
      %p155 = scmp.ne.s32.totalorder %s144, %s147
      %p156 = scmp.eq.s32.totalorder %s24, 1
      %p157 = por %p155, %p156
      %p158 = scmp.ne.s32.totalorder %s147, %s148
      %p159 = scmp.eq.s32.totalorder %s24, 0
      %p160 = por %p158, %p159
      %p161 = scmp.ne.s32.totalorder %s147, %s148
      %p162 = scmp.eq.s32.totalorder %s25, 1
      %p163 = por %p161, %p162
      %p165 = scmp.ne.s32.totalorder %s148, %s164
      %p166 = scmp.eq.s32.totalorder %s25, 0
      %p167 = por %p165, %p166
      %s168 = ssub.s32 %s19, %s26
      %p169 = scmp.eq.s32.totalorder %s168, 0
      %s171 = sadd.s32 %s170, 1
      %s172 = scalar_select %p169, %s170, %s171
      %p175 = pneg %p169
      %p176 = scmp.eq.s32.totalorder %s19, 1
      %p177 = por %p175, %p176
      %p178 = scmp.ne.s32.totalorder %s170, %s173
      %p179 = scmp.eq.s32.totalorder %s19, 0
      %p180 = por %p178, %p179
      %p181 = scmp.ne.s32.totalorder %s170, %s173
      %p182 = scmp.eq.s32.totalorder %s24, 1
      %p183 = por %p181, %p182
      %p184 = scmp.ne.s32.totalorder %s173, %s174
      %p185 = scmp.eq.s32.totalorder %s24, 0
      %p186 = por %p184, %p185
      %p187 = scmp.ne.s32.totalorder %s173, %s174
      %p188 = scmp.eq.s32.totalorder %s25, 1
      %p189 = por %p187, %p188
      %p191 = scmp.ne.s32.totalorder %s174, %s190
      %p192 = scmp.eq.s32.totalorder %s25, 0
      %p193 = por %p191, %p192
      %p194 = scmp.le.s32.totalorder 1, %s19
      %p195 = scmp.lt.s32.totalorder %s19, 3
      %p196 = pnand %p194, %p195
      %p197 = pneg %p196
      // Predicated region
      $region9: #{tpu_custom_call.1} parent=5 // pred_check
        _
      $region10: #{tpu_custom_call.1} parent=5 // pred_check_branch
        %199 = sbr.rel (%p196) target = $region12
      $region11: #{tpu_custom_call.1} parent=5 // pred_region
        %s200 = ssub.s32 %s19, 1
        // Predicated region
        $region13: #{tpu_custom_call.1} parent=11 // pred_check
          %p201 = pneg %p92
        $region14: #{tpu_custom_call.1} parent=11 // pred_check_branch
          %203 = sbr.rel (%p201) target = $region16
        $region15: #{tpu_custom_call.1} parent=11 // pred_region
          _
        $region16: #{tpu_custom_call.1} parent=11 // pred_fallthru
          _
        // Predicated region
        $region17: #{tpu_custom_call.1} parent=11 // pred_check
          %p204 = pneg %p113
        $region18: #{tpu_custom_call.1} parent=11 // pred_check_branch
          %206 = sbr.rel (%p204) target = $region20
        $region19: #{tpu_custom_call.1} parent=11 // pred_region
          _
        $region20: #{tpu_custom_call.1} parent=11 // pred_fallthru
          _
        // Predicated region
        $region21: #{tpu_custom_call.1} parent=11 // pred_check
          %p207 = pneg %p134
        $region22: #{tpu_custom_call.1} parent=11 // pred_check_branch
          %209 = sbr.rel (%p207) target = $region24
        $region23: #{tpu_custom_call.1} parent=11 // pred_region
          _
        $region24: #{tpu_custom_call.1} parent=11 // pred_fallthru
          _
      $region12: #{tpu_custom_call.1} parent=5 // pred_fallthru
        _
      %p210 = scmp.lt.s32.totalorder %s19, 2
      // Predicated region
      $region25: #{tpu_custom_call.1} parent=5 // pred_check
        %p211 = pneg %p210
      $region26: #{tpu_custom_call.1} parent=5 // pred_check_branch
        %213 = sbr.rel (%p211) target = $region28
      $region27: #{tpu_custom_call.1} parent=5 // pred_region
        // Predicated region
        $region29: #{tpu_custom_call.1} parent=27 // pred_check
          %p214 = pneg %p39
        $region30: #{tpu_custom_call.1} parent=27 // pred_check_branch
          %216 = sbr.rel (%p214) target = $region32
        $region31: #{tpu_custom_call.1} parent=27 // pred_region
          %p217 = scmp.lt.s32.totalorder %s19, 1
          %s218 = scalar_select %p217, %s19, 1
          %s219 = smul.addr %s218, 2
          %s220 = smul.addr %s219, 4
          %s221 = scalar_lea.vmem %s0, %s220
        $region32: #{tpu_custom_call.1} parent=27 // pred_fallthru
          _
        // Predicated region
        $region33: #{tpu_custom_call.1} parent=27 // pred_check
          %p222 = pneg %p65
        $region34: #{tpu_custom_call.1} parent=27 // pred_check_branch
          %224 = sbr.rel (%p222) target = $region36
        $region35: #{tpu_custom_call.1} parent=27 // pred_region
          %p225 = scmp.lt.s32.totalorder %s19, 1
          %s226 = scalar_select %p225, %s19, 1
          %s227 = smul.addr %s226, 2
          %s228 = smul.addr %s227, 4
          %s229 = scalar_lea.vmem %s1, %s228
        $region36: #{tpu_custom_call.1} parent=27 // pred_fallthru
          _
      $region28: #{tpu_custom_call.1} parent=5 // pred_fallthru
        _
      %p230 = scmp.le.s32.totalorder 1, %s19
      %p231 = scmp.lt.s32.totalorder %s19, 3
      %p232 = pnand %p230, %p231
      %p233 = pneg %p232
      // Predicated region
      $region37: #{tpu_custom_call.1} parent=5 // pred_check
        _
      $region38: #{tpu_custom_call.1} parent=5 // pred_check_branch
        %235 = sbr.rel (%p232) target = $region40
      $region39: #{tpu_custom_call.1} parent=5 // pred_region
        %s236 = ssub.s32 %s19, 1
        %p237 = scmp.lt.s32.totalorder %s24, 1
        %s238 = scalar_select %p237, %s24, 1
        %s239 = smul.addr %s238, 2
        %s240 = smul.addr %s239, 4
        %s241 = scalar_lea.vmem %s0, %s240
        %p242 = pneg %p45
        %p243 = pneg %p42
        %p244 = scmp.lt.s32.totalorder %s24, 1
        %s245 = scalar_select %p244, %s24, 1
        %s246 = smul.addr %s245, 2
        %s247 = smul.addr %s246, 4
        %s248 = scalar_lea.vmem %s1, %s247
        %p249 = pneg %p71
        %p250 = pneg %p68
        %p251 = pneg %p92
        %p252 = pneg %p89
        %p253 = pneg %p113
        %p254 = pneg %p110
        %p255 = pneg %p134
        %p256 = pneg %p131
        %p257 = pneg %p160
        %p258 = pneg %p157
        %s259 = sand.u32 %s147, 1
        %s260 = scalar_lea.sflag [#allocation3], %s259
        %s261 = sand.u32 %s147, 1
        %s262 = smul.addr %s261, 16
        %s263 = scalar_lea.vmem [#allocation2], %s262
        %p264 = pneg %p186
        %p265 = pneg %p183
        %s266 = sand.u32 %s173, 1
        %s267 = scalar_lea.sflag [#allocation5], %s266
        %s268 = sand.u32 %s173, 1
        %s269 = smul.addr %s268, 8
        %s270 = scalar_lea.vmem [#allocation4], %s269
        %p271 = scmp.lt.s32.totalorder %s24, 1
        %s272 = scalar_select %p271, %s24, 1
        %s273 = smul.addr %s272, 2
        %s274 = smul.addr %s273, 4
        %s275 = scalar_lea.vmem %s0, %s274
        %p276 = scmp.lt.s32.totalorder %s24, 1
        %s277 = scalar_select %p276, %s24, 1
        %s278 = smul.addr %s277, 2
        %s279 = smul.addr %s278, 4
        %s280 = scalar_lea.vmem %s1, %s279
        %v282 = vld [vmem:[%s275] sm:$0xf]
        %v283 = vld [vmem:[%s275 + $0x4] sm:$0xf]
        %v284 = vld [vmem:[%s280] sm:$0xf]
        %v285 = vld [vmem:[%s280 + $0x4] sm:$0xf]
        %v286 = vld [vmem:[%s2] sm:$0xf]
        %v287 = vld [vmem:[%s2 + $0x4] sm:$0xf]
        %v290 = vunpack.c.l.b16 %v286
        %v291 = vunpack.c.l.b16 %v287
        %v292 = vpack.c.b16 %v291, %v290
        %v295 = vunpack.c.l.b16 %v282
        %v296 = vunpack.c.l.b16 %v283
        %v297 = vpack.c.b16 %v296, %v295
        %vm298 = vcmask 64512
        %v300 = vsel %vm298, %v292, 0
        %v303 = vsel %vm298, %v297, 0
        %305 = vmatprep.subr.bf16.mxu0 0
        %306 = vmatpush1.bf16.xpose.msra.mxu0 0
        %307 = vmatprep.subr.bf16.mxu0 0
        %308 = vmatpush1.bf16.xpose.msra.mxu0 0
        %309 = vmatprep.subr.bf16.mxu0 0
        %310 = vmatpush1.bf16.xpose.msra.mxu0 0
        %311 = vmatprep.subr.bf16.mxu0 0
        %312 = vmatpush1.bf16.xpose.msra.mxu0 0
        %313 = vmatprep.subr.bf16.mxu0 0
        %314 = vmatpush1.bf16.xpose.msra.mxu0 0
        %315 = vmatprep.subr.bf16.mxu0 0
        %316 = vmatpush1.bf16.xpose.msra.mxu0 0
        %317 = vmatprep.subr.bf16.mxu0 0
        %318 = vmatpush1.bf16.xpose.msra.mxu0 0
        %319 = vmatprep.subr.bf16.mxu0 0
        %320 = vmatpush1.bf16.xpose.msra.mxu0 %v303
        %321 = vmatprep.subr.bf16.mxu0 0
        %322 = vmatpush2.bf16.xpose.msra.mxu0 0
        %323 = vmatprep.subr.bf16.mxu0 0
        %324 = vmatpush2.bf16.xpose.msra.mxu0 0
        %325 = vmatprep.subr.bf16.mxu0 0
        %326 = vmatpush2.bf16.xpose.msra.mxu0 0
        %327 = vmatprep.subr.bf16.mxu0 0
        %328 = vmatpush2.bf16.xpose.msra.mxu0 0
        %329 = vmatprep.subr.bf16.mxu0 0
        %330 = vmatpush2.bf16.xpose.msra.mxu0 0
        %331 = vmatprep.subr.bf16.mxu0 0
        %332 = vmatpush2.bf16.xpose.msra.mxu0 0
        %333 = vmatprep.subr.bf16.mxu0 0
        %334 = vmatpush2.bf16.xpose.msra.mxu0 0
        %335 = vmatprep.subr.bf16.mxu0 0
        %336 = vmatpush2.bf16.xpose.msra.mxu0 0
        %337 = vmatprep.mubr.bf16.mxu0 0
        %338 = vmatmul.mubr.bf16.gmra.mxu0 %v300
        %v339 = vpop.f32.mrf.mxu0
        %v340 = vadd.f32 0.0, %v339
        %v341 = vpop.f32.mrf.mxu0
        %v342 = vpop.f32.mrf.mxu0
        %v343 = vadd.f32 0.0, %v342
        %v344 = vpop.f32.mrf.mxu0
        %345 = vdwg.mxu0
        %v346 = vpack.c.bf16 %v343, %v340
        %v347 = vld [vmem:[%s3] sm:$0xf]
        %v348 = vld [vmem:[%s3 + $0x4] sm:$0xf]
        %v349 = vld [vmem:[%s3 + $0x8] sm:$0xf]
        %v350 = vld [vmem:[%s3 + $0xc] sm:$0xf]
        %v351 = vld [vmem:[%s3 + $0x10] sm:$0xf]
        %v352 = vld [vmem:[%s3 + $0x14] sm:$0xf]
        %v353 = vld [vmem:[%s3 + $0x18] sm:$0xf]
        %v354 = vld [vmem:[%s3 + $0x1c] sm:$0xf]
        %v355 = vld [vmem:[%s3 + $0x20] sm:$0xf]
        %v356 = vld [vmem:[%s3 + $0x24] sm:$0xf]
        %v357 = vld [vmem:[%s3 + $0x28] sm:$0xf]
        %v358 = vld [vmem:[%s3 + $0x2c] sm:$0xf]
        %v359 = vld [vmem:[%s3 + $0x30] sm:$0xf]
        %v360 = vld [vmem:[%s3 + $0x34] sm:$0xf]
        %v361 = vld [vmem:[%s3 + $0x38] sm:$0xf]
        %v362 = vld [vmem:[%s3 + $0x3c] sm:$0xf]
        %v365 = vunpack.c.l.b16 %v284
        %v366 = vunpack.c.l.b16 %v285
        %v367 = vpack.c.b16 %v366, %v365
        %v384 = vunpack.c.l.b16 %v347
        %v385 = vunpack.c.l.b16 %v348
        %v386 = vunpack.c.l.b16 %v349
        %v387 = vunpack.c.l.b16 %v350
        %v388 = vunpack.c.l.b16 %v351
        %v389 = vunpack.c.l.b16 %v352
        %v390 = vunpack.c.l.b16 %v353
        %v391 = vunpack.c.l.b16 %v354
        %v392 = vunpack.c.l.b16 %v355
        %v393 = vunpack.c.l.b16 %v356
        %v394 = vunpack.c.l.b16 %v357
        %v395 = vunpack.c.l.b16 %v358
        %v396 = vunpack.c.l.b16 %v359
        %v397 = vunpack.c.l.b16 %v360
        %v398 = vunpack.c.l.b16 %v361
        %v399 = vunpack.c.l.b16 %v362
        %v400 = vpack.c.b16 %v385, %v384
        %v401 = vpack.c.b16 %v387, %v386
        %v402 = vpack.c.b16 %v389, %v388
        %v403 = vpack.c.b16 %v391, %v390
        %v404 = vpack.c.b16 %v393, %v392
        %v405 = vpack.c.b16 %v395, %v394
        %v406 = vpack.c.b16 %v397, %v396
        %v407 = vpack.c.b16 %v399, %v398
        %vm408 = vcmask 228352
        %v410 = vsel %vm408, %v367, 0
        %v413 = vsel %vm408, %v400, 0
        %v416 = vsel %vm408, %v401, 0
        %v419 = vsel %vm408, %v402, 0
        %v422 = vsel %vm408, %v403, 0
        %v425 = vsel %vm408, %v404, 0
        %v428 = vsel %vm408, %v405, 0
        %v431 = vsel %vm408, %v406, 0
        %v434 = vsel %vm408, %v407, 0
        %436 = vmatprep.subr.bf16.mxu0 0
        %437 = vmatpush1.bf16.xpose.msra.mxu0 %v434
        %438 = vmatprep.subr.bf16.mxu0 0
        %439 = vmatpush1.bf16.xpose.msra.mxu0 %v431
        %440 = vmatprep.subr.bf16.mxu0 0
        %441 = vmatpush1.bf16.xpose.msra.mxu0 %v428
        %442 = vmatprep.subr.bf16.mxu0 0
        %443 = vmatpush1.bf16.xpose.msra.mxu0 %v425
        %444 = vmatprep.subr.bf16.mxu0 0
        %445 = vmatpush1.bf16.xpose.msra.mxu0 %v422
        %446 = vmatprep.subr.bf16.mxu0 0
        %447 = vmatpush1.bf16.xpose.msra.mxu0 %v419
        %448 = vmatprep.subr.bf16.mxu0 0
        %449 = vmatpush1.bf16.xpose.msra.mxu0 %v416
        %450 = vmatprep.subr.bf16.mxu0 0
        %451 = vmatpush1.bf16.xpose.msra.mxu0 %v413
        %452 = vmatprep.subr.bf16.mxu0 0
        %453 = vmatpush2.bf16.xpose.msra.mxu0 0
        %454 = vmatprep.subr.bf16.mxu0 0
        %455 = vmatpush2.bf16.xpose.msra.mxu0 0
        %456 = vmatprep.subr.bf16.mxu0 0
        %457 = vmatpush2.bf16.xpose.msra.mxu0 0
        %458 = vmatprep.subr.bf16.mxu0 0
        %459 = vmatpush2.bf16.xpose.msra.mxu0 0
        %460 = vmatprep.subr.bf16.mxu0 0
        %461 = vmatpush2.bf16.xpose.msra.mxu0 0
        %462 = vmatprep.subr.bf16.mxu0 0
        %463 = vmatpush2.bf16.xpose.msra.mxu0 0
        %464 = vmatprep.subr.bf16.mxu0 0
        %465 = vmatpush2.bf16.xpose.msra.mxu0 0
        %466 = vmatprep.subr.bf16.mxu0 0
        %467 = vmatpush2.bf16.xpose.msra.mxu0 0
        %468 = vmatprep.mubr.bf16.mxu0 0
        %469 = vmatmul.mubr.bf16.gmra.mxu0 %v410
        %v470 = vpop.f32.mrf.mxu0
        %v471 = vadd.f32 0.0, %v470
        %v472 = vpop.f32.mrf.mxu0
        %v473 = vpop.f32.mrf.mxu0
        %v474 = vadd.f32 0.0, %v473
        %v475 = vpop.f32.mrf.mxu0
        %476 = vdwg.mxu0
        %v477 = vpack.c.bf16 %v474, %v471
        %vm478 = vcmask 130048
        %v480 = vsel %vm478, %v346, 0
        %482 = vmatprep.subr.bf16.mxu0 0
        %483 = vmatpush1.bf16.msra.mxu0 0
        %484 = vmatprep.subr.bf16.mxu0 0
        %485 = vmatpush1.bf16.msra.mxu0 0
        %486 = vmatprep.subr.bf16.mxu0 0
        %487 = vmatpush1.bf16.msra.mxu0 0
        %488 = vmatprep.subr.bf16.mxu0 0
        %489 = vmatpush1.bf16.msra.mxu0 0
        %490 = vmatprep.subr.bf16.mxu0 0
        %491 = vmatpush1.bf16.msra.mxu0 0
        %492 = vmatprep.subr.bf16.mxu0 0
        %493 = vmatpush1.bf16.msra.mxu0 0
        %494 = vmatprep.subr.bf16.mxu0 0
        %495 = vmatpush1.bf16.msra.mxu0 0
        %496 = vmatprep.subr.bf16.mxu0 0
        %497 = vmatpush1.bf16.msra.mxu0 %v477
        %498 = vmatprep.subr.bf16.mxu0 0
        %499 = vmatpush2.bf16.msra.mxu0 0
        %500 = vmatprep.subr.bf16.mxu0 0
        %501 = vmatpush2.bf16.msra.mxu0 0
        %502 = vmatprep.subr.bf16.mxu0 0
        %503 = vmatpush2.bf16.msra.mxu0 0
        %504 = vmatprep.subr.bf16.mxu0 0
        %505 = vmatpush2.bf16.msra.mxu0 0
        %506 = vmatprep.subr.bf16.mxu0 0
        %507 = vmatpush2.bf16.msra.mxu0 0
        %508 = vmatprep.subr.bf16.mxu0 0
        %509 = vmatpush2.bf16.msra.mxu0 0
        %510 = vmatprep.subr.bf16.mxu0 0
        %511 = vmatpush2.bf16.msra.mxu0 0
        %512 = vmatprep.subr.bf16.mxu0 0
        %513 = vmatpush2.bf16.msra.mxu0 0
        %514 = vmatprep.mubr.bf16.mxu0 0
        %515 = vmatmul.mubr.bf16.gmra.mxu0 %v480
        %v516 = vpop.f32.mrf.mxu0
        %v517 = vadd.f32 0.0, %v516
        %v518 = vpop.f32.mrf.mxu0
        %v519 = vpop.f32.mrf.mxu0
        %v520 = vadd.f32 0.0, %v519
        %v521 = vpop.f32.mrf.mxu0
        %522 = vdwg.mxu0
        %v523 = vsel %vm408, %v517, 0.0
        %524 = vadd.xlane.f32.xlu0 %v523
        %v525 = vpop.xlane.xlu0 %524
        %v526 = vrot.slane %v525, 4
        %v527 = vadd.f32 %v525, %v526
        %v528 = vrot.slane %v527, 2
        %v529 = vadd.f32 %v527, %v528
        %v530 = vrot.slane %v529, 1
        %v531 = vadd.f32 %v529, %v530
        %s532 = vtos %v531
        %s533 = smul.f32 %s532, 0.004464286
        %v534 = vstv %s533
        %v535 = vsub.f32 %v517, %v534
        %v536 = vmul.f32 %v535, %v535
        %v537 = vsel %vm408, %v536, 0.0
        %538 = vadd.xlane.f32.xlu0 %v537
        %v539 = vpop.xlane.xlu0 %538
        %v540 = vrot.slane %v539, 4
        %v541 = vadd.f32 %v539, %v540
        %v542 = vrot.slane %v541, 2
        %v543 = vadd.f32 %v541, %v542
        %v544 = vrot.slane %v543, 1
        %v545 = vadd.f32 %v543, %v544
        %s546 = vtos %v545
        %s547 = smul.f32 %s546, 0.004464286
        %s548 = sadd.f32 %s547, 1e-05
        %v549 = vstv %s548
        %v550 = vrsqrt.pop %v549
        %s551 = vtos %v550
        %v552 = vstv %s551
        %v553 = vmul.f32 %v535, %v552
        %v554 = vsel %vm408, %v553, -inf
        %555 = vmax.xlane.f32.xlu0 %v554
        %v556 = vpop.xlane.xlu0 %555
        %v557 = vsub.f32 %v553, %v556
        %v558 = vmul.f32 %v557, 1.442695
        %v559 = vpow.pop %v558
        %v560 = vsel %vm408, %v559, 0.0
        %561 = vadd.xlane.f32.xlu0 %v560
        %v562 = vpop.xlane.xlu0 %561
        %v563 = vrcp.pop %v562
        %v564 = vmul.f32 %v559, %v563
        %v565 = vadd.f32 %v564, 0.0
        %v566 = vpack.c.bf16 %v564, %v564
        %568 = vrot.lane.b32.xlu0 %v520, 96
        %v569 = vpop.permute.xlu0 %568
        %v571 = vsel %vm408, %v569, 0.0
        %572 = vadd.xlane.f32.xlu0 %v571
        %v573 = vpop.xlane.xlu0 %572
        %v574 = vrot.slane %v573, 4
        %v575 = vadd.f32 %v573, %v574
        %v576 = vrot.slane %v575, 2
        %v577 = vadd.f32 %v575, %v576
        %v578 = vrot.slane %v577, 1
        %v579 = vadd.f32 %v577, %v578
        %s580 = vtos %v579
        %s581 = smul.f32 %s580, 0.004464286
        %v582 = vstv %s581
        %v583 = vsub.f32 %v520, %v582
        %v584 = vmul.f32 %v583, %v583
        %586 = vrot.lane.b32.xlu0 %v584, 96
        %v587 = vpop.permute.xlu0 %586
        %v589 = vsel %vm408, %v587, 0.0
        %590 = vadd.xlane.f32.xlu0 %v589
        %v591 = vpop.xlane.xlu0 %590
        %v592 = vrot.slane %v591, 4
        %v593 = vadd.f32 %v591, %v592
        %v594 = vrot.slane %v593, 2
        %v595 = vadd.f32 %v593, %v594
        %v596 = vrot.slane %v595, 1
        %v597 = vadd.f32 %v595, %v596
        %s598 = vtos %v597
        %s599 = smul.f32 %s598, 0.004464286
        %s600 = sadd.f32 %s599, 1e-05
        %v601 = vstv %s600
        %v602 = vrsqrt.pop %v601
        %s603 = vtos %v602
        %v604 = vstv %s603
        %v605 = vmul.f32 %v583, %v604
        %vm606 = vcmask 490752
        %v607 = vsel %vm606, %v605, -inf
        %608 = vmax.xlane.f32.xlu0 %v607
        %v609 = vpop.xlane.xlu0 %608
        %v610 = vsub.f32 %v605, %v609
        %v611 = vmul.f32 %v610, 1.442695
        %v612 = vpow.pop %v611
        %614 = vrot.lane.b32.xlu0 %v612, 96
        %v615 = vpop.permute.xlu0 %614
        %v617 = vsel %vm408, %v615, 0.0
        %618 = vadd.xlane.f32.xlu0 %v617
        %v619 = vpop.xlane.xlu0 %618
        %v620 = vrcp.pop %v619
        %v621 = vmul.f32 %v612, %v620
        %623 = vrot.lane.b32.xlu0 %v621, 96
        %v624 = vpop.permute.xlu0 %623
        %v626 = vadd.f32 %v565, %v624
        %v627 = vpack.c.bf16 %v621, %v621
        %629 = vrot.lane.b32.xlu0 %v477, 32
        %v630 = vpop.permute.xlu0 %629
        %632 = vrot.lane.b32.xlu0 %v627, 96
        %v633 = vpop.permute.xlu0 %632
        %v635 = vsel %vm408, %v630, 0
        %v638 = vsel %vm408, %v633, 0
        %640 = vmatprep.subr.bf16.mxu0 0
        %641 = vmatpush1.bf16.xpose.msra.mxu0 0
        %642 = vmatprep.subr.bf16.mxu0 0
        %643 = vmatpush1.bf16.xpose.msra.mxu0 0
        %644 = vmatprep.subr.bf16.mxu0 0
        %645 = vmatpush1.bf16.xpose.msra.mxu0 0
        %646 = vmatprep.subr.bf16.mxu0 0
        %647 = vmatpush1.bf16.xpose.msra.mxu0 0
        %648 = vmatprep.subr.bf16.mxu0 0
        %649 = vmatpush1.bf16.xpose.msra.mxu0 0
        %650 = vmatprep.subr.bf16.mxu0 0
        %651 = vmatpush1.bf16.xpose.msra.mxu0 0
        %652 = vmatprep.subr.bf16.mxu0 0
        %653 = vmatpush1.bf16.xpose.msra.mxu0 0
        %654 = vmatprep.subr.bf16.mxu0 0
        %655 = vmatpush1.bf16.xpose.msra.mxu0 %v638
        %656 = vmatprep.subr.bf16.mxu0 0
        %657 = vmatpush2.bf16.xpose.msra.mxu0 0
        %658 = vmatprep.subr.bf16.mxu0 0
        %659 = vmatpush2.bf16.xpose.msra.mxu0 0
        %660 = vmatprep.subr.bf16.mxu0 0
        %661 = vmatpush2.bf16.xpose.msra.mxu0 0
        %662 = vmatprep.subr.bf16.mxu0 0
        %663 = vmatpush2.bf16.xpose.msra.mxu0 0
        %664 = vmatprep.subr.bf16.mxu0 0
        %665 = vmatpush2.bf16.xpose.msra.mxu0 0
        %666 = vmatprep.subr.bf16.mxu0 0
        %667 = vmatpush2.bf16.xpose.msra.mxu0 0
        %668 = vmatprep.subr.bf16.mxu0 0
        %669 = vmatpush2.bf16.xpose.msra.mxu0 0
        %670 = vmatprep.subr.bf16.mxu0 0
        %671 = vmatpush2.bf16.xpose.msra.mxu0 0
        %672 = vmatprep.mubr.bf16.mxu0 0
        %673 = vmatmul.mubr.bf16.gmra.mxu0 %v635
        %v674 = vpop.f32.mrf.mxu0
        %v675 = vadd.f32 0.0, %v674
        %v676 = vpop.f32.mrf.mxu0
        %v677 = vpop.f32.mrf.mxu0
        %v678 = vadd.f32 0.0, %v677
        %v679 = vpop.f32.mrf.mxu0
        %680 = vdwg.mxu0
        %681 = vrot.lane.b32.xlu0 %v477, 64
        %v682 = vpop.permute.xlu0 %681
        %v684 = vsel %vm408, %v682, 0
        %v687 = vsel %vm408, %v566, 0
        %689 = vmatprep.subr.bf16.mxu0 0
        %690 = vmatpush1.bf16.xpose.msra.mxu0 0
        %691 = vmatprep.subr.bf16.mxu0 0
        %692 = vmatpush1.bf16.xpose.msra.mxu0 0
        %693 = vmatprep.subr.bf16.mxu0 0
        %694 = vmatpush1.bf16.xpose.msra.mxu0 0
        %695 = vmatprep.subr.bf16.mxu0 0
        %696 = vmatpush1.bf16.xpose.msra.mxu0 0
        %697 = vmatprep.subr.bf16.mxu0 0
        %698 = vmatpush1.bf16.xpose.msra.mxu0 0
        %699 = vmatprep.subr.bf16.mxu0 0
        %700 = vmatpush1.bf16.xpose.msra.mxu0 0
        %701 = vmatprep.subr.bf16.mxu0 0
        %702 = vmatpush1.bf16.xpose.msra.mxu0 0
        %703 = vmatprep.subr.bf16.mxu0 0
        %704 = vmatpush1.bf16.xpose.msra.mxu0 %v687
        %705 = vmatprep.subr.bf16.mxu0 0
        %706 = vmatpush2.bf16.xpose.msra.mxu0 0
        %707 = vmatprep.subr.bf16.mxu0 0
        %708 = vmatpush2.bf16.xpose.msra.mxu0 0
        %709 = vmatprep.subr.bf16.mxu0 0
        %710 = vmatpush2.bf16.xpose.msra.mxu0 0
        %711 = vmatprep.subr.bf16.mxu0 0
        %712 = vmatpush2.bf16.xpose.msra.mxu0 0
        %713 = vmatprep.subr.bf16.mxu0 0
        %714 = vmatpush2.bf16.xpose.msra.mxu0 0
        %715 = vmatprep.subr.bf16.mxu0 0
        %716 = vmatpush2.bf16.xpose.msra.mxu0 0
        %717 = vmatprep.subr.bf16.mxu0 0
        %718 = vmatpush2.bf16.xpose.msra.mxu0 0
        %719 = vmatprep.subr.bf16.mxu0 0
        %720 = vmatpush2.bf16.xpose.msra.mxu0 0
        %721 = vmatprep.mubr.bf16.mxu0 0
        %722 = vmatmul.mubr.bf16.gmra.mxu0 %v684
        %v723 = vpop.f32.mrf.mxu0
        %v724 = vadd.f32 %v675, %v723
        %v725 = vpop.f32.mrf.mxu0
        %v726 = vpop.f32.mrf.mxu0
        %v727 = vadd.f32 %v678, %v726
        %v728 = vpop.f32.mrf.mxu0
        %729 = vdwg.mxu0
        %v730 = vpack.c.bf16 %v727, %v724
        %v731 = vld [vmem:[%s4] sm:$0xf]
        %v733 = vsel %vm298, %v730, 0
        %vm735 = vcmask 1043456
        %v737 = vsel %vm735, %v731, 0
        %739 = vmatprep.subr.bf16.mxu0 0
        %740 = vmatpush1.bf16.msra.mxu0 0
        %741 = vmatprep.subr.bf16.mxu0 0
        %742 = vmatpush1.bf16.msra.mxu0 0
        %743 = vmatprep.subr.bf16.mxu0 0
        %744 = vmatpush1.bf16.msra.mxu0 0
        %745 = vmatprep.subr.bf16.mxu0 0
        %746 = vmatpush1.bf16.msra.mxu0 0
        %747 = vmatprep.subr.bf16.mxu0 0
        %748 = vmatpush1.bf16.msra.mxu0 0
        %749 = vmatprep.subr.bf16.mxu0 0
        %750 = vmatpush1.bf16.msra.mxu0 0
        %751 = vmatprep.subr.bf16.mxu0 0
        %752 = vmatpush1.bf16.msra.mxu0 0
        %753 = vmatprep.subr.bf16.mxu0 0
        %754 = vmatpush1.bf16.msra.mxu0 %v737
        %755 = vmatprep.subr.bf16.mxu0 0
        %756 = vmatpush2.bf16.msra.mxu0 0
        %757 = vmatprep.subr.bf16.mxu0 0
        %758 = vmatpush2.bf16.msra.mxu0 0
        %759 = vmatprep.subr.bf16.mxu0 0
        %760 = vmatpush2.bf16.msra.mxu0 0
        %761 = vmatprep.subr.bf16.mxu0 0
        %762 = vmatpush2.bf16.msra.mxu0 0
        %763 = vmatprep.subr.bf16.mxu0 0
        %764 = vmatpush2.bf16.msra.mxu0 0
        %765 = vmatprep.subr.bf16.mxu0 0
        %766 = vmatpush2.bf16.msra.mxu0 0
        %767 = vmatprep.subr.bf16.mxu0 0
        %768 = vmatpush2.bf16.msra.mxu0 0
        %769 = vmatprep.subr.bf16.mxu0 0
        %770 = vmatpush2.bf16.msra.mxu0 0
        %771 = vmatprep.mubr.bf16.mxu0 0
        %772 = vmatmul.mubr.bf16.gmra.mxu0 %v733
        %v773 = vpop.f32.mrf.mxu0
        %v774 = vadd.f32 0.0, %v773
        %v775 = vpop.f32.mrf.mxu0
        %v776 = vpop.f32.mrf.mxu0
        %v777 = vadd.f32 0.0, %v776
        %v778 = vpop.f32.mrf.mxu0
        %779 = vdwg.mxu0
        %780 = vst [vmem:[%s263] sm:$0xff] %v774
        %781 = vst [vmem:[%s263 + $0x8] sm:$0xff] %v777
        %v782 = vmul.f32 %v626, 0.5
        %783 = vst.msk [vmem:[%s270] sm:$0xff] %vm408, %v782
        %s784 = sand.u32 %s147, 1
        %s785 = scalar_lea.sflag [#allocation3], %s784
        %s786 = sand.u32 %s147, 1
        %s787 = smul.addr %s786, 16
        %s788 = scalar_lea.vmem [#allocation2], %s787
        %s789 = sand.u32 %s173, 1
        %s790 = scalar_lea.sflag [#allocation5], %s789
        %s791 = sand.u32 %s173, 1
        %s792 = smul.addr %s791, 8
        %s793 = scalar_lea.vmem [#allocation4], %s792
        // Predicated region
        $region41: #{tpu_custom_call.1} parent=39 // pred_check
          %p794 = pneg %p157
        $region42: #{tpu_custom_call.1} parent=39 // pred_check_branch
          %796 = sbr.rel (%p794) target = $region44
        $region43: #{tpu_custom_call.1} parent=39 // pred_region
          %s798 = ssub.s32 256, 256
          %799 = vsyncadd %s785, %s798
          %s800 = smul.addr %s24, 2
          %s801 = smul.addr %s800, 128
          %s802 = scalar_lea.hbm %s5, %s801
          %s803 = sshll.u32 %s788, 4
          %s804 = int_to_ptr.vmem [resolvable:$true] %s803
          %809 = dma.vmem_to_hbm [thread:$0]  %s804, 256, %s802, %s785, 128, 128, 8
        $region44: #{tpu_custom_call.1} parent=39 // pred_fallthru
          _
        // Predicated region
        $region45: #{tpu_custom_call.1} parent=39 // pred_check
          %p810 = pneg %p183
        $region46: #{tpu_custom_call.1} parent=39 // pred_check_branch
          %812 = sbr.rel (%p810) target = $region48
        $region47: #{tpu_custom_call.1} parent=39 // pred_region
          %s814 = ssub.s32 128, 128
          %815 = vsyncadd %s790, %s814
          %s816 = smul.addr %s24, 128
          %s817 = scalar_lea.hbm %s6, %s816
          %s819 = sshll.u32 %s793, 4
          %s820 = int_to_ptr.vmem [resolvable:$true] %s819
          %822 = dma.vmem_to_hbm [thread:$0]  %s820, 128, %s817, %s790
        $region48: #{tpu_custom_call.1} parent=39 // pred_fallthru
          _
      $region40: #{tpu_custom_call.1} parent=5 // pred_fallthru
        _
      %p823 = scmp.le.s32.totalorder 2, %s19
      // Predicated region
      $region49: #{tpu_custom_call.1} parent=5 // pred_check
        %p824 = pneg %p823
      $region50: #{tpu_custom_call.1} parent=5 // pred_check_branch
        %826 = sbr.rel (%p824) target = $region52
      $region51: #{tpu_custom_call.1} parent=5 // pred_region
        %s827 = ssub.s32 %s19, 2
        // Predicated region
        $region53: #{tpu_custom_call.1} parent=51 // pred_check
          %p828 = pneg %p163
        $region54: #{tpu_custom_call.1} parent=51 // pred_check_branch
          %830 = sbr.rel (%p828) target = $region56
        $region55: #{tpu_custom_call.1} parent=51 // pred_region
          %s831 = sand.u32 %s148, 1
          %s832 = scalar_lea.sflag [#allocation3], %s831
          %s833 = sand.u32 %s148, 1
          %s834 = smul.addr %s833, 16
          %s835 = scalar_lea.vmem [#allocation2], %s834
          %836 = dma.done %s832, 256
        $region56: #{tpu_custom_call.1} parent=51 // pred_fallthru
          _
        // Predicated region
        $region57: #{tpu_custom_call.1} parent=51 // pred_check
          %p837 = pneg %p189
        $region58: #{tpu_custom_call.1} parent=51 // pred_check_branch
          %839 = sbr.rel (%p837) target = $region60
        $region59: #{tpu_custom_call.1} parent=51 // pred_region
          %s840 = sand.u32 %s174, 1
          %s841 = scalar_lea.sflag [#allocation5], %s840
          %s842 = sand.u32 %s174, 1
          %s843 = smul.addr %s842, 8
          %s844 = scalar_lea.vmem [#allocation4], %s843
          %845 = dma.done %s841, 128
        $region60: #{tpu_custom_call.1} parent=51 // pred_fallthru
          _
      $region52: #{tpu_custom_call.1} parent=5 // pred_fallthru
        _
    $region6: #{tpu_custom_call.1} parent=1 // loop_footer
      %s23 = sadd.s32 1, %s19
    $region7: #{tpu_custom_call.1} parent=1 // loop_footer_branch
      %18 = sbr.rel target = $region3
    $region8: #{tpu_custom_call.1} parent=1 // loop_exit
      _
    %846 = vsyncpa [#allocation3], 1
    %s847 = scalar_lea.sflag [#allocation3], 1
    %848 = vsyncpa %s847, 1
    %849 = vsyncpa [#allocation5], 1
    %s850 = scalar_lea.sflag [#allocation5], 1
    %851 = vsyncpa %s850, 1

</llo_original>
